<compile_context>
chip_gen: v7x
topology: tpu7x:2x2x1
jax: 0.10.0
libtpu: 0.0.40
codegen_flags: <defaults>
</compile_context>

<pallas_src>
import jax
import jax.numpy as jnp
from jax.experimental import pallas as pl
from jax.experimental.pallas import tpu as pltpu

HIDDEN = 64
MAX_L_TILE = 4096  # lanes per tile; (64, 4096) f32 intermediates ~= 1 MiB each


def head2_kernel(x_ref, w1_ref, b1_ref, w2_ref, b2_ref, w3_ref, b3_ref, o_ref):
    # x_ref : (C_in, Lt) f32   one (batch, L-tile) block, channels on sublanes
    # w1    : (64, C_in) bf16  PyTorch Conv1d (out, in) layout
    # b1    : (64, 1)    f32
    # w2    : (64, 64)   bf16
    # b2    : (64, 1)    f32
    # w3    : (64, 1)    f32   final 64->1 projection as a per-channel scale
    # b3    : (1, 1)     f32   in SMEM
    # o_ref : (1, Lt)    f32   lane-dense output row
    x = x_ref[...].astype(jnp.bfloat16)

    # Layer 1: (64, C_in) @ (C_in, Lt) -> (64, Lt), bf16 MXU, f32 accumulate.
    h1 = jnp.dot(w1_ref[...], x, preferred_element_type=jnp.float32)
    h1 = jnp.maximum(h1 + b1_ref[...], 0.0)

    # Layer 2: (64, 64) @ (64, Lt) -> (64, Lt).
    h2 = jnp.dot(w2_ref[...], h1.astype(jnp.bfloat16),
                 preferred_element_type=jnp.float32)
    h2 = jnp.maximum(h2 + b2_ref[...], 0.0)

    # Layer 3 (64 -> 1): per-channel scale + sublane reduction on VPU/XLU,
    # keeping the MXU free for the dominant 64x64 layer.
    y = jnp.sum(h2 * w3_ref[...], axis=0, keepdims=True) + b3_ref[0, 0]
    o_ref[...] = y  # (1, Lt), full-width lane-dense store


def head2_forward(x_ncl, params):
    """x_ncl: (B, C_in, L) float32 (PyTorch NCL). Returns (B, L) like Flatten()."""
    w1, b1, w2, b2, w3, b3 = params
    B, C_in, L = x_ncl.shape
    H = w1.shape[0]  # 64

    # L tile: multiple of 128, capped at MAX_L_TILE; pad L up to a multiple of
    # the tile so the grid divides evenly (padding tail is sliced off below).
    l_pad128 = max(128, ((L + 127) // 128) * 128)
    l_tile = l_pad128 if l_pad128 <= MAX_L_TILE else MAX_L_TILE
    l_pad = ((L + l_tile - 1) // l_tile) * l_tile
    num_l_tiles = l_pad // l_tile

    x_p = x_ncl.astype(jnp.float32)
    if l_pad != L:
        x_p = jnp.pad(x_p, ((0, 0), (0, 0), (0, l_pad - L)))

    # One-time wrapper-side cast of the tiny weight matrices to bf16.
    w1_bf = w1.astype(jnp.bfloat16)
    w2_bf = w2.astype(jnp.bfloat16)

    flops = 2 * B * l_pad * (C_in * H + H * H + H)
    bytes_accessed = (4 * B * l_pad * (C_in + 1)
                      + 2 * (C_in * H + H * H) + 4 * (3 * H + 1))

    out = pl.pallas_call(
        head2_kernel,
        out_shape=jax.ShapeDtypeStruct((B, 1, l_pad), jnp.float32),
        grid_spec=pltpu.PrefetchScalarGridSpec(
            num_scalar_prefetch=0,
            grid=(B, num_l_tiles),
            in_specs=[
                # x: squeeze the batch dim; kernel sees (C_in, l_tile).
                pl.BlockSpec((None, C_in, l_tile), lambda b, l: (b, 0, l)),
                pl.BlockSpec((H, C_in), lambda b, l: (0, 0)),   # w1 (bf16)
                pl.BlockSpec((H, 1), lambda b, l: (0, 0)),      # b1
                pl.BlockSpec((H, H), lambda b, l: (0, 0)),      # w2 (bf16)
                pl.BlockSpec((H, 1), lambda b, l: (0, 0)),      # b2
                pl.BlockSpec((H, 1), lambda b, l: (0, 0)),      # w3
                pl.BlockSpec(memory_space=pltpu.MemorySpace.SMEM),  # b3 scalar
            ],
            # Output row is lane-dense: kernel sees (1, l_tile).
            out_specs=pl.BlockSpec((None, 1, l_tile), lambda b, l: (b, 0, l)),
        ),
        compiler_params=pltpu.CompilerParams(
            dimension_semantics=("parallel", "parallel"),
            vmem_limit_bytes=32 * 1024 * 1024,
        ),
        cost_estimate=pl.CostEstimate(
            flops=flops, transcendentals=0, bytes_accessed=bytes_accessed),
    )(x_p, w1_bf, b1, w2_bf, b2, w3, b3)

    # Flatten(): (B, 1, L_pad) -> (B, L); drop the L padding tail.
    return out[:, 0, :L]


def init_params(key, input_dim, hidden=HIDDEN):
    """Deterministic parameter init, stored in PyTorch Conv1d (out, in) layout.

    w3 (PyTorch (1, 64, 1)) is stored as a (64, 1) per-channel scale.
    Biases are stored as (out, 1) so they broadcast along L inside the kernel.
    """
    k1, k2, k3, k4, k5, k6 = jax.random.split(key, 6)
    w1 = jax.random.normal(k1, (hidden, input_dim), jnp.float32) * 0.1
    b1 = jax.random.normal(k2, (hidden, 1), jnp.float32) * 0.1
    w2 = jax.random.normal(k3, (hidden, hidden), jnp.float32) * 0.1
    b2 = jax.random.normal(k4, (hidden, 1), jnp.float32) * 0.1
    w3 = jax.random.normal(k5, (hidden, 1), jnp.float32) * 0.1
    b3 = jax.random.normal(k6, (1, 1), jnp.float32) * 0.1
    return (w1, b1, w2, b2, w3, b3)


def head2_ref(x_ncl, params):
    """Pure-JAX f32 reference matching the PyTorch forward exactly."""
    w1, b1, w2, b2, w3, b3 = params
    h1 = jnp.maximum(jnp.einsum('oc,bcl->bol', w1, x_ncl) + b1[None], 0.0)
    h2 = jnp.maximum(jnp.einsum('oc,bcl->bol', w2, h1) + b2[None], 0.0)
    y = jnp.einsum('c,bcl->bl', w3[:, 0], h2) + b3[0, 0]
    return y  # (B, L)


if __name__ == "__main__":
    key = jax.random.PRNGKey(0)
    kx, kp = jax.random.split(key)

    B, C_in, L = 2, 4, 16
    x = jax.random.normal(kx, (B, C_in, L), jnp.float32)  # PyTorch NCL input
    params = init_params(kp, input_dim=C_in)

    out = head2_forward(x, params)
    out = jax.block_until_ready(out)

    ref = head2_ref(x, params)
    assert out.shape == (B, L), out.shape
    # Layers 1/2 run in bf16 on the MXU (f32 accumulation), so tolerance is
    # relaxed vs. the pure-f32 reference.
    assert jnp.allclose(out, ref, atol=5e-2, rtol=5e-2), (
        "mismatch vs reference, max abs diff = "
        f"{float(jnp.max(jnp.abs(out - ref)))}")

    print("KERNEL_OK")
</pallas_src>

<mosaic_0001>
module attributes {stable_mosaic.version = 11 : i64} {
  func.func @head2_kernel(%arg0: i32, %arg1: i32, %arg2: memref<1x4x128xf32, #tpu.memory_space<vmem>>, %arg3: memref<64x4xbf16, #tpu.memory_space<vmem>>, %arg4: memref<64x1xf32, #tpu.memory_space<vmem>>, %arg5: memref<64x64xbf16, #tpu.memory_space<vmem>>, %arg6: memref<64x1xf32, #tpu.memory_space<vmem>>, %arg7: memref<64x1xf32, #tpu.memory_space<vmem>>, %arg8: memref<1x1xf32, #tpu.memory_space<smem>>, %arg9: memref<1x1x128xf32, #tpu.memory_space<vmem>>) attributes {dimension_semantics = [#tpu.dimension_semantics<parallel>, #tpu.dimension_semantics<parallel>], iteration_bounds = array<i64: 2, 1>, scalar_prefetch = 0 : i64, scratch_operands = 0 : i64, tpu.core_type = #tpu.core_type<tc>, window_params = [{transform_indices = @transform_0, window_bounds = array<i64: 1, 4, 128>}, {pipeline_mode = #tpu.pipeline_mode<synchronous>, transform_indices = @transform_1, window_bounds = array<i64: 64, 4>}, {pipeline_mode = #tpu.pipeline_mode<synchronous>, transform_indices = @transform_2, window_bounds = array<i64: 64, 1>}, {pipeline_mode = #tpu.pipeline_mode<synchronous>, transform_indices = @transform_3, window_bounds = array<i64: 64, 64>}, {pipeline_mode = #tpu.pipeline_mode<synchronous>, transform_indices = @transform_4, window_bounds = array<i64: 64, 1>}, {pipeline_mode = #tpu.pipeline_mode<synchronous>, transform_indices = @transform_5, window_bounds = array<i64: 64, 1>}, {transform_indices = @transform_6, window_bounds = array<i64: 1, 1>}, {transform_indices = @transform_7, window_bounds = array<i64: 1, 1, 128>}]} {
    %c0 = arith.constant 0 : index
    %c0_0 = arith.constant 0 : index
    %c0_1 = arith.constant 0 : index
    %0 = vector.load %arg2[%c0, %c0_0, %c0_1] : memref<1x4x128xf32, #tpu.memory_space<vmem>>, vector<1x4x128xf32>
    %1 = vector.shape_cast %0 : vector<1x4x128xf32> to vector<4x128xf32>
    %2 = arith.truncf %1 : vector<4x128xf32> to vector<4x128xbf16>
    %c0_2 = arith.constant 0 : index
    %c0_3 = arith.constant 0 : index
    %3 = vector.load %arg3[%c0_2, %c0_3] : memref<64x4xbf16, #tpu.memory_space<vmem>>, vector<64x4xbf16>
    %cst = arith.constant dense<0.000000e+00> : vector<64x128xf32>
    %4 = tpu.matmul %3, %2, %cst {dimension_numbers = #tpu.dot_dimension_numbers<[1], [0], [0], [1], [0, 0, 1, 1], [], []>} : vector<64x4xbf16>, vector<4x128xbf16>, vector<64x128xf32> -> vector<64x128xf32>
    %c0_4 = arith.constant 0 : index
    %c0_5 = arith.constant 0 : index
    %5 = vector.load %arg4[%c0_4, %c0_5] : memref<64x1xf32, #tpu.memory_space<vmem>>, vector<64x1xf32>
    %6 = vector.broadcast %5 : vector<64x1xf32> to vector<64x128xf32>
    %7 = arith.addf %4, %6 : vector<64x128xf32>
    %cst_6 = arith.constant 0.000000e+00 : f32
    %8 = vector.broadcast %cst_6 : f32 to vector<64x128xf32>
    %9 = arith.maximumf %7, %8 : vector<64x128xf32>
    %c0_7 = arith.constant 0 : index
    %c0_8 = arith.constant 0 : index
    %10 = vector.load %arg5[%c0_7, %c0_8] : memref<64x64xbf16, #tpu.memory_space<vmem>>, vector<64x64xbf16>
    %11 = arith.truncf %9 : vector<64x128xf32> to vector<64x128xbf16>
    %cst_9 = arith.constant dense<0.000000e+00> : vector<64x128xf32>
    %12 = tpu.matmul %10, %11, %cst_9 {dimension_numbers = #tpu.dot_dimension_numbers<[1], [0], [0], [1], [0, 0, 1, 1], [], []>} : vector<64x64xbf16>, vector<64x128xbf16>, vector<64x128xf32> -> vector<64x128xf32>
    %c0_10 = arith.constant 0 : index
    %c0_11 = arith.constant 0 : index
    %13 = vector.load %arg6[%c0_10, %c0_11] : memref<64x1xf32, #tpu.memory_space<vmem>>, vector<64x1xf32>
    %14 = vector.broadcast %13 : vector<64x1xf32> to vector<64x128xf32>
    %15 = arith.addf %12, %14 : vector<64x128xf32>
    %cst_12 = arith.constant 0.000000e+00 : f32
    %16 = vector.broadcast %cst_12 : f32 to vector<64x128xf32>
    %17 = arith.maximumf %15, %16 : vector<64x128xf32>
    %c0_13 = arith.constant 0 : index
    %c0_14 = arith.constant 0 : index
    %18 = vector.load %arg7[%c0_13, %c0_14] : memref<64x1xf32, #tpu.memory_space<vmem>>, vector<64x1xf32>
    %19 = vector.broadcast %18 : vector<64x1xf32> to vector<64x128xf32>
    %20 = arith.mulf %17, %19 : vector<64x128xf32>
    %cst_15 = arith.constant dense<0.000000e+00> : vector<128xf32>
    %21 = vector.multi_reduction <add>, %20, %cst_15 [0] : vector<64x128xf32> to vector<128xf32>
    %22 = vector.shape_cast %21 : vector<128xf32> to vector<1x128xf32>
    %c0_16 = arith.constant 0 : index
    %c0_17 = arith.constant 0 : index
    %23 = memref.load %arg8[%c0_16, %c0_17] : memref<1x1xf32, #tpu.memory_space<smem>>
    %24 = vector.broadcast %23 : f32 to vector<1x128xf32>
    %25 = arith.addf %22, %24 : vector<1x128xf32>
    %c0_18 = arith.constant 0 : index
    %c0_19 = arith.constant 0 : index
    %c0_20 = arith.constant 0 : index
    %26 = vector.load %arg9[%c0_18, %c0_19, %c0_20] : memref<1x1x128xf32, #tpu.memory_space<vmem>>, vector<1x1x128xf32>
    %27 = vector.shape_cast %26 : vector<1x1x128xf32> to vector<1x128xf32>
    %28 = vector.shape_cast %25 : vector<1x128xf32> to vector<1x1x128xf32>
    tpu.vector_store %arg9[%c0_18, %c0_19, %c0_20], %28 {strides = array<i32>} : memref<1x1x128xf32, #tpu.memory_space<vmem>>, vector<1x1x128xf32>,
    return
  }
  func.func @transform_0(%arg0: i32, %arg1: i32) -> (i32, i32, i32) {
    %c0_i32 = arith.constant 0 : i32
    %c0_i32_0 = arith.constant 0 : i32
    return %arg0, %c0_i32, %arg1 : i32, i32, i32
  }
  func.func @transform_1(%arg0: i32, %arg1: i32) -> (i32, i32) {
    %c0_i32 = arith.constant 0 : i32
    %c0_i32_0 = arith.constant 0 : i32
    %c0_i32_1 = arith.constant 0 : i32
    return %c0_i32, %c0_i32_0 : i32, i32
  }
  func.func @transform_2(%arg0: i32, %arg1: i32) -> (i32, i32) {
    %c0_i32 = arith.constant 0 : i32
    %c0_i32_0 = arith.constant 0 : i32
    %c0_i32_1 = arith.constant 0 : i32
    return %c0_i32, %c0_i32_0 : i32, i32
  }
  func.func @transform_3(%arg0: i32, %arg1: i32) -> (i32, i32) {
    %c0_i32 = arith.constant 0 : i32
    %c0_i32_0 = arith.constant 0 : i32
    %c0_i32_1 = arith.constant 0 : i32
    return %c0_i32, %c0_i32_0 : i32, i32
  }
  func.func @transform_4(%arg0: i32, %arg1: i32) -> (i32, i32) {
    %c0_i32 = arith.constant 0 : i32
    %c0_i32_0 = arith.constant 0 : i32
    %c0_i32_1 = arith.constant 0 : i32
    return %c0_i32, %c0_i32_0 : i32, i32
  }
  func.func @transform_5(%arg0: i32, %arg1: i32) -> (i32, i32) {
    %c0_i32 = arith.constant 0 : i32
    %c0_i32_0 = arith.constant 0 : i32
    %c0_i32_1 = arith.constant 0 : i32
    return %c0_i32, %c0_i32_0 : i32, i32
  }
  func.func @transform_6(%arg0: i32, %arg1: i32) -> (i32, i32) {
    %c0_i32 = arith.constant 0 : i32
    %c0_i32_0 = arith.constant 0 : i32
    %c0_i32_1 = arith.constant 0 : i32
    return %c0_i32, %c0_i32_0 : i32, i32
  }
  func.func @transform_7(%arg0: i32, %arg1: i32) -> (i32, i32, i32) {
    %c0_i32 = arith.constant 0 : i32
    %c0_i32_0 = arith.constant 0 : i32
    return %arg0, %c0_i32, %arg1 : i32, i32, i32
  }
}

</mosaic_0001>

<llo_original>
// kernel: tpu_custom_call.1
$region0: #{tpu_custom_call.1}
  #allocation0 [shape = 'u32[]', space=smem, size = 0x4, offset = 0x4, fixed_abs, tag = 'smem constant byte address 0x4 - core index']
  #allocation1 [shape = 'u32[144,128]{1,0:T(1,128)}', space=vmem, size = 0x12000, scoped, tag = 'internal scratch']
  #allocation2 [shape = 'f32[1,1]{1,0:T(1,128)S(6)}', space=smem, size = 0x200, scoped, tag = 'scoped memory for tpu_custom_call.1']
  %s0 = inlined_call_operand.vmem [shape: f32[2,4,128], index: 0, kind: input, shape index: {}]
  %s1 = inlined_call_operand.vmem [shape: bf16[64,4], index: 1, kind: input, shape index: {}]
  %s2 = inlined_call_operand.vmem [shape: f32[64,1], index: 2, kind: input, shape index: {}]
  %s3 = inlined_call_operand.vmem [shape: bf16[64,64], index: 3, kind: input, shape index: {}]
  %s4 = inlined_call_operand.vmem [shape: f32[64,1], index: 4, kind: input, shape index: {}]
  %s5 = inlined_call_operand.vmem [shape: f32[64,1], index: 5, kind: input, shape index: {}]
  %s6 = inlined_call_operand.<no memory space> [shape: f32[1,1], index: 6, kind: input, shape index: {}]
  %s7 = inlined_call_operand.hbm [shape: f32[2,1,128], index: 7, kind: output, shape index: {}]
  %s8 = sld [smem:[#allocation0]]
  $region61: #{tpu_custom_call.1} parent=0
    _
  %s10 = ssub.s32 1, %s8
  %s11 = scalar_select 0, %s10, %s8
  %12 = sst [smem:[#allocation2]] %s6
  $region1: #{tpu_custom_call.1} parent=0
    #allocation3 [shape = 'u8[1024]{0}', space=vmem, size = 0x400, scoped, tag = 'output window, operand 0']
    #allocation4 [shape = 's32[2]{0}', space=sflag, size = 0x8, scoped, tag = 'scoped memory for tpu_custom_call.1']
    %13 = vsyncpa [#allocation4], 0
    %s14 = scalar_lea.sflag [#allocation4], 1
    %15 = vsyncpa %s14, 0
    loop: start=0, step=1, limit=4
    $region2: #{tpu_custom_call.1} parent=1 // loop_pre_header
      _
    $region3: #{tpu_custom_call.1} parent=1 // loop_header
      %s17 = sphi 0, %s21
      %p18 = scmp.ge.s32.totalorder %s17, 4
      %s24 = sphi 0, %s36
      %s25 = sphi 0, %s32
      %s26 = sphi 0, %s24
      %s27 = sphi 0, %s25
      %s28 = sphi 0, %s26
      %s29 = sphi 0, %s27
      %s41 = sphi 0, %s43
      %s44 = sphi 0, %s41
      %s45 = sphi 0, %s44
      %s61 = sphi 0, %s45
      %s65 = sphi 0, %s65
      %s67 = sphi 0, %s65
      %s68 = sphi 0, %s67
      %s82 = sphi 0, %s68
      %s86 = sphi 0, %s86
      %s88 = sphi 0, %s86
      %s89 = sphi 0, %s88
      %s103 = sphi 0, %s89
      %s107 = sphi 0, %s107
      %s109 = sphi 0, %s107
      %s110 = sphi 0, %s109
      %s124 = sphi 0, %s110
      %s128 = sphi 0, %s128
      %s130 = sphi 0, %s128
      %s131 = sphi 0, %s130
      %s145 = sphi 0, %s131
      %s149 = sphi 0, %s149
      %s151 = sphi 0, %s149
      %s152 = sphi 0, %s151
      %s166 = sphi 0, %s152
      %s170 = sphi 0, %s170
      %s172 = sphi 0, %s170
      %s173 = sphi 0, %s172
      %s187 = sphi 0, %s173
      %s195 = sphi 0, %s197
      %s198 = sphi 0, %s195
      %s199 = sphi 0, %s198
      %s215 = sphi 0, %s199
    $region4: #{tpu_custom_call.1} parent=1 // loop_header_branch
      %20 = sbr.rel (%p18) target = $region8
    $region5: #{tpu_custom_call.1} parent=1 // loop_body
      %s22 = ssub.s32 %s17, 1
      %s23 = ssub.s32 %s17, 2
      %s30 = sadd.s32 1, %s25
      %p31 = scmp.ge.s32.totalorder %s30, 1
      %s32 = scalar_select %p31, 0, %s30
      %s33 = sadd.s32 1, %s24
      %s34 = scalar_select %p31, %s33, %s24
      %p35 = scmp.ge.s32.totalorder %s34, 2
      %s36 = scalar_select %p35, 0, %s34
      %s37 = ssub.s32 %s24, %s36
      %s38 = ssub.s32 %s25, %s32
      %s39 = sor.u32 %s37, %s38
      %p40 = scmp.eq.s32.totalorder %s39, 0
      %s42 = sadd.s32 %s41, 1
      %s43 = scalar_select %p40, %s41, %s42
      %p46 = pneg %p40
      %p47 = scmp.eq.s32.totalorder %s17, 1
      %p48 = por %p46, %p47
      %p49 = scmp.ne.s32.totalorder %s41, %s44
      %p50 = scmp.eq.s32.totalorder %s17, 0
      %p51 = por %p49, %p50
      %p52 = scmp.ne.s32.totalorder %s41, %s44
      %p53 = scmp.eq.s32.totalorder %s22, 1
      %p54 = por %p52, %p53
      %p55 = scmp.ne.s32.totalorder %s44, %s45
      %p56 = scmp.eq.s32.totalorder %s22, 0
      %p57 = por %p55, %p56
      %p58 = scmp.ne.s32.totalorder %s44, %s45
      %p59 = scmp.eq.s32.totalorder %s23, 1
      %p60 = por %p58, %p59
      %p62 = scmp.ne.s32.totalorder %s45, %s61
      %p63 = scmp.eq.s32.totalorder %s23, 0
      %p64 = por %p62, %p63
      %s66 = sadd.s32 %s65, 1
      %p69 = scmp.eq.s32.totalorder %s17, 1
      %p70 = scmp.ne.s32.totalorder %s65, %s67
      %p71 = scmp.eq.s32.totalorder %s17, 0
      %p72 = por %p70, %p71
      %p73 = scmp.ne.s32.totalorder %s65, %s67
      %p74 = scmp.eq.s32.totalorder %s22, 1
      %p75 = por %p73, %p74
      %p76 = scmp.ne.s32.totalorder %s67, %s68
      %p77 = scmp.eq.s32.totalorder %s22, 0
      %p78 = por %p76, %p77
      %p79 = scmp.ne.s32.totalorder %s67, %s68
      %p80 = scmp.eq.s32.totalorder %s23, 1
      %p81 = por %p79, %p80
      %p83 = scmp.ne.s32.totalorder %s68, %s82
      %p84 = scmp.eq.s32.totalorder %s23, 0
      %p85 = por %p83, %p84
      %s87 = sadd.s32 %s86, 1
      %p90 = scmp.eq.s32.totalorder %s17, 1
      %p91 = scmp.ne.s32.totalorder %s86, %s88
      %p92 = scmp.eq.s32.totalorder %s17, 0
      %p93 = por %p91, %p92
      %p94 = scmp.ne.s32.totalorder %s86, %s88
      %p95 = scmp.eq.s32.totalorder %s22, 1
      %p96 = por %p94, %p95
      %p97 = scmp.ne.s32.totalorder %s88, %s89
      %p98 = scmp.eq.s32.totalorder %s22, 0
      %p99 = por %p97, %p98
      %p100 = scmp.ne.s32.totalorder %s88, %s89
      %p101 = scmp.eq.s32.totalorder %s23, 1
      %p102 = por %p100, %p101
      %p104 = scmp.ne.s32.totalorder %s89, %s103
      %p105 = scmp.eq.s32.totalorder %s23, 0
      %p106 = por %p104, %p105
      %s108 = sadd.s32 %s107, 1
      %p111 = scmp.eq.s32.totalorder %s17, 1
      %p112 = scmp.ne.s32.totalorder %s107, %s109
      %p113 = scmp.eq.s32.totalorder %s17, 0
      %p114 = por %p112, %p113
      %p115 = scmp.ne.s32.totalorder %s107, %s109
      %p116 = scmp.eq.s32.totalorder %s22, 1
      %p117 = por %p115, %p116
      %p118 = scmp.ne.s32.totalorder %s109, %s110
      %p119 = scmp.eq.s32.totalorder %s22, 0
      %p120 = por %p118, %p119
      %p121 = scmp.ne.s32.totalorder %s109, %s110
      %p122 = scmp.eq.s32.totalorder %s23, 1
      %p123 = por %p121, %p122
      %p125 = scmp.ne.s32.totalorder %s110, %s124
      %p126 = scmp.eq.s32.totalorder %s23, 0
      %p127 = por %p125, %p126
      %s129 = sadd.s32 %s128, 1
      %p132 = scmp.eq.s32.totalorder %s17, 1
      %p133 = scmp.ne.s32.totalorder %s128, %s130
      %p134 = scmp.eq.s32.totalorder %s17, 0
      %p135 = por %p133, %p134
      %p136 = scmp.ne.s32.totalorder %s128, %s130
      %p137 = scmp.eq.s32.totalorder %s22, 1
      %p138 = por %p136, %p137
      %p139 = scmp.ne.s32.totalorder %s130, %s131
      %p140 = scmp.eq.s32.totalorder %s22, 0
      %p141 = por %p139, %p140
      %p142 = scmp.ne.s32.totalorder %s130, %s131
      %p143 = scmp.eq.s32.totalorder %s23, 1
      %p144 = por %p142, %p143
      %p146 = scmp.ne.s32.totalorder %s131, %s145
      %p147 = scmp.eq.s32.totalorder %s23, 0
      %p148 = por %p146, %p147
      %s150 = sadd.s32 %s149, 1
      %p153 = scmp.eq.s32.totalorder %s17, 1
      %p154 = scmp.ne.s32.totalorder %s149, %s151
      %p155 = scmp.eq.s32.totalorder %s17, 0
      %p156 = por %p154, %p155
      %p157 = scmp.ne.s32.totalorder %s149, %s151
      %p158 = scmp.eq.s32.totalorder %s22, 1
      %p159 = por %p157, %p158
      %p160 = scmp.ne.s32.totalorder %s151, %s152
      %p161 = scmp.eq.s32.totalorder %s22, 0
      %p162 = por %p160, %p161
      %p163 = scmp.ne.s32.totalorder %s151, %s152
      %p164 = scmp.eq.s32.totalorder %s23, 1
      %p165 = por %p163, %p164
      %p167 = scmp.ne.s32.totalorder %s152, %s166
      %p168 = scmp.eq.s32.totalorder %s23, 0
      %p169 = por %p167, %p168
      %s171 = sadd.s32 %s170, 1
      %p174 = scmp.eq.s32.totalorder %s17, 1
      %p175 = scmp.ne.s32.totalorder %s170, %s172
      %p176 = scmp.eq.s32.totalorder %s17, 0
      %p177 = por %p175, %p176
      %p178 = scmp.ne.s32.totalorder %s170, %s172
      %p179 = scmp.eq.s32.totalorder %s22, 1
      %p180 = por %p178, %p179
      %p181 = scmp.ne.s32.totalorder %s172, %s173
      %p182 = scmp.eq.s32.totalorder %s22, 0
      %p183 = por %p181, %p182
      %p184 = scmp.ne.s32.totalorder %s172, %s173
      %p185 = scmp.eq.s32.totalorder %s23, 1
      %p186 = por %p184, %p185
      %p188 = scmp.ne.s32.totalorder %s173, %s187
      %p189 = scmp.eq.s32.totalorder %s23, 0
      %p190 = por %p188, %p189
      %s191 = ssub.s32 %s24, %s36
      %s192 = ssub.s32 %s25, %s32
      %s193 = sor.u32 %s191, %s192
      %p194 = scmp.eq.s32.totalorder %s193, 0
      %s196 = sadd.s32 %s195, 1
      %s197 = scalar_select %p194, %s195, %s196
      %p200 = pneg %p194
      %p201 = scmp.eq.s32.totalorder %s17, 1
      %p202 = por %p200, %p201
      %p203 = scmp.ne.s32.totalorder %s195, %s198
      %p204 = scmp.eq.s32.totalorder %s17, 0
      %p205 = por %p203, %p204
      %p206 = scmp.ne.s32.totalorder %s195, %s198
      %p207 = scmp.eq.s32.totalorder %s22, 1
      %p208 = por %p206, %p207
      %p209 = scmp.ne.s32.totalorder %s198, %s199
      %p210 = scmp.eq.s32.totalorder %s22, 0
      %p211 = por %p209, %p210
      %p212 = scmp.ne.s32.totalorder %s198, %s199
      %p213 = scmp.eq.s32.totalorder %s23, 1
      %p214 = por %p212, %p213
      %p216 = scmp.ne.s32.totalorder %s199, %s215
      %p217 = scmp.eq.s32.totalorder %s23, 0
      %p218 = por %p216, %p217
      %p219 = scmp.le.s32.totalorder 1, %s17
      %p220 = scmp.lt.s32.totalorder %s17, 3
      %p221 = pnand %p219, %p220
      %p222 = pneg %p221
      // Predicated region
      $region9: #{tpu_custom_call.1} parent=5 // pred_check
        _
      $region10: #{tpu_custom_call.1} parent=5 // pred_check_branch
        %224 = sbr.rel (%p221) target = $region12
      $region11: #{tpu_custom_call.1} parent=5 // pred_region
        %s225 = ssub.s32 %s17, 1
        // Predicated region
        $region13: #{tpu_custom_call.1} parent=11 // pred_check
          %p226 = pneg %p78
        $region14: #{tpu_custom_call.1} parent=11 // pred_check_branch
          %228 = sbr.rel (%p226) target = $region16
        $region15: #{tpu_custom_call.1} parent=11 // pred_region
          _
        $region16: #{tpu_custom_call.1} parent=11 // pred_fallthru
          _
        // Predicated region
        $region17: #{tpu_custom_call.1} parent=11 // pred_check
          %p229 = pneg %p99
        $region18: #{tpu_custom_call.1} parent=11 // pred_check_branch
          %231 = sbr.rel (%p229) target = $region20
        $region19: #{tpu_custom_call.1} parent=11 // pred_region
          _
        $region20: #{tpu_custom_call.1} parent=11 // pred_fallthru
          _
        // Predicated region
        $region21: #{tpu_custom_call.1} parent=11 // pred_check
          %p232 = pneg %p120
        $region22: #{tpu_custom_call.1} parent=11 // pred_check_branch
          %234 = sbr.rel (%p232) target = $region24
        $region23: #{tpu_custom_call.1} parent=11 // pred_region
          _
        $region24: #{tpu_custom_call.1} parent=11 // pred_fallthru
          _
        // Predicated region
        $region25: #{tpu_custom_call.1} parent=11 // pred_check
          %p235 = pneg %p141
        $region26: #{tpu_custom_call.1} parent=11 // pred_check_branch
          %237 = sbr.rel (%p235) target = $region28
        $region27: #{tpu_custom_call.1} parent=11 // pred_region
          _
        $region28: #{tpu_custom_call.1} parent=11 // pred_fallthru
          _
        // Predicated region
        $region29: #{tpu_custom_call.1} parent=11 // pred_check
          %p238 = pneg %p162
        $region30: #{tpu_custom_call.1} parent=11 // pred_check_branch
          %240 = sbr.rel (%p238) target = $region32
        $region31: #{tpu_custom_call.1} parent=11 // pred_region
          _
        $region32: #{tpu_custom_call.1} parent=11 // pred_fallthru
          _
        // Predicated region
        $region33: #{tpu_custom_call.1} parent=11 // pred_check
          %p241 = pneg %p183
        $region34: #{tpu_custom_call.1} parent=11 // pred_check_branch
          %243 = sbr.rel (%p241) target = $region36
        $region35: #{tpu_custom_call.1} parent=11 // pred_region
          _
        $region36: #{tpu_custom_call.1} parent=11 // pred_fallthru
          _
      $region12: #{tpu_custom_call.1} parent=5 // pred_fallthru
        _
      %p244 = scmp.lt.s32.totalorder %s17, 2
      // Predicated region
      $region37: #{tpu_custom_call.1} parent=5 // pred_check
        %p245 = pneg %p244
      $region38: #{tpu_custom_call.1} parent=5 // pred_check_branch
        %247 = sbr.rel (%p245) target = $region40
      $region39: #{tpu_custom_call.1} parent=5 // pred_region
        // Predicated region
        $region41: #{tpu_custom_call.1} parent=39 // pred_check
          %p248 = pneg %p51
        $region42: #{tpu_custom_call.1} parent=39 // pred_check_branch
          %250 = sbr.rel (%p248) target = $region44
        $region43: #{tpu_custom_call.1} parent=39 // pred_region
          %p251 = scmp.lt.s32.totalorder %s24, 1
          %s252 = scalar_select %p251, %s24, 1
          %p253 = scmp.lt.s32.totalorder %s25, 0
          %s254 = scalar_select %p253, %s25, 0
          %s255 = sadd.s32 %s254, %s252
          %s256 = smul.addr %s255, 4
          %s257 = scalar_lea.vmem %s0, %s256
        $region44: #{tpu_custom_call.1} parent=39 // pred_fallthru
          _
      $region40: #{tpu_custom_call.1} parent=5 // pred_fallthru
        _
      %p258 = scmp.le.s32.totalorder 1, %s17
      %p259 = scmp.lt.s32.totalorder %s17, 3
      %p260 = pnand %p258, %p259
      %p261 = pneg %p260
      // Predicated region
      $region45: #{tpu_custom_call.1} parent=5 // pred_check
        _
      $region46: #{tpu_custom_call.1} parent=5 // pred_check_branch
        %263 = sbr.rel (%p260) target = $region48
      $region47: #{tpu_custom_call.1} parent=5 // pred_region
        %s264 = ssub.s32 %s17, 1
        %p265 = scmp.lt.s32.totalorder %s26, 1
        %s266 = scalar_select %p265, %s26, 1
        %p267 = scmp.lt.s32.totalorder %s27, 0
        %s268 = scalar_select %p267, %s27, 0
        %s269 = sadd.s32 %s268, %s266
        %s270 = smul.addr %s269, 4
        %s271 = scalar_lea.vmem %s0, %s270
        %p272 = pneg %p57
        %p273 = pneg %p54
        %p274 = pneg %p78
        %p275 = pneg %p75
        %p276 = pneg %p99
        %p277 = pneg %p96
        %p278 = pneg %p120
        %p279 = pneg %p117
        %p280 = pneg %p141
        %p281 = pneg %p138
        %p282 = pneg %p162
        %p283 = pneg %p159
        %p284 = pneg %p183
        %p285 = pneg %p180
        %p286 = pneg %p211
        %p287 = pneg %p208
        %s288 = sand.u32 %s198, 1
        %s289 = scalar_lea.sflag [#allocation4], %s288
        %s290 = sand.u32 %s198, 1
        %s291 = scalar_lea.vmem [#allocation3], %s290
        %p292 = scmp.lt.s32.totalorder %s26, 1
        %s293 = scalar_select %p292, %s26, 1
        %p294 = scmp.lt.s32.totalorder %s27, 0
        %s295 = scalar_select %p294, %s27, 0
        %s296 = sadd.s32 %s295, %s293
        %s297 = smul.addr %s296, 4
        %s298 = scalar_lea.vmem %s0, %s297
        %v300 = vld [vmem:[%s298] sm:$0xf]
        %v301 = vpack.c.bf16 %v300, %v300
        %v302 = vld [vmem:[%s1] sm:$0xf]
        %v303 = vld [vmem:[%s1 + $0x4] sm:$0xf]
        %v304 = vld [vmem:[%s1 + $0x8] sm:$0xf]
        %v305 = vld [vmem:[%s1 + $0xc] sm:$0xf]
        %v306 = vld [vmem:[%s1 + $0x10] sm:$0xf]
        %v307 = vld [vmem:[%s1 + $0x14] sm:$0xf]
        %v308 = vld [vmem:[%s1 + $0x18] sm:$0xf]
        %v309 = vld [vmem:[%s1 + $0x1c] sm:$0xf]
        %v310 = vld [vmem:[%s2] sm:$0xff]
        %v311 = vld [vmem:[%s2 + $0x8] sm:$0xff]
        %v312 = vld [vmem:[%s2 + $0x10] sm:$0xff]
        %v313 = vld [vmem:[%s2 + $0x18] sm:$0xff]
        %v314 = vld [vmem:[%s2 + $0x20] sm:$0xff]
        %v315 = vld [vmem:[%s2 + $0x28] sm:$0xff]
        %v316 = vld [vmem:[%s2 + $0x30] sm:$0xff]
        %v317 = vld [vmem:[%s2 + $0x38] sm:$0xff]
        %319 = vset.pattern.permute.xlu0 0
        %320 = vperm.xlu0 %319, %v310
        %v321 = vpop.permute.xlu0 %320
        %324 = vset.pattern.permute.xlu0 0
        %325 = vperm.xlu0 %324, %v311
        %v326 = vpop.permute.xlu0 %325
        %329 = vset.pattern.permute.xlu0 0
        %330 = vperm.xlu0 %329, %v312
        %v331 = vpop.permute.xlu0 %330
        %334 = vset.pattern.permute.xlu0 0
        %335 = vperm.xlu0 %334, %v313
        %v336 = vpop.permute.xlu0 %335
        %339 = vset.pattern.permute.xlu0 0
        %340 = vperm.xlu0 %339, %v314
        %v341 = vpop.permute.xlu0 %340
        %344 = vset.pattern.permute.xlu0 0
        %345 = vperm.xlu0 %344, %v315
        %v346 = vpop.permute.xlu0 %345
        %349 = vset.pattern.permute.xlu0 0
        %350 = vperm.xlu0 %349, %v316
        %v351 = vpop.permute.xlu0 %350
        %354 = vset.pattern.permute.xlu0 0
        %355 = vperm.xlu0 %354, %v317
        %v356 = vpop.permute.xlu0 %355
        %v366 = vunpack.c.l.b16 %v302
        %v367 = vunpack.c.l.b16 %v303
        %v368 = vunpack.c.l.b16 %v304
        %v369 = vunpack.c.l.b16 %v305
        %v370 = vunpack.c.l.b16 %v306
        %v371 = vunpack.c.l.b16 %v307
        %v372 = vunpack.c.l.b16 %v308
        %v373 = vunpack.c.l.b16 %v309
        %v374 = vpack.c.b16 %v367, %v366
        %v375 = vpack.c.b16 %v369, %v368
        %v376 = vpack.c.b16 %v371, %v370
        %v377 = vpack.c.b16 %v373, %v372
        %vm378 = vcmask 31744
        %v380 = vsel %vm378, %v374, 0
        %v383 = vsel %vm378, %v375, 0
        %v386 = vsel %vm378, %v376, 0
        %v389 = vsel %vm378, %v377, 0
        %vm391 = vcmask 1041408
        %v393 = vsel %vm391, %v301, 0
        %395 = vmatprep.subr.bf16.mxu0 0
        %396 = vmatpush1.bf16.msra.mxu0 %v393
        %397 = vmatprep.subr.bf16.mxu0 0
        %398 = vmatpush1.bf16.msra.mxu0 0
        %399 = vmatprep.subr.bf16.mxu0 0
        %400 = vmatpush1.bf16.msra.mxu0 0
        %401 = vmatprep.subr.bf16.mxu0 0
        %402 = vmatpush1.bf16.msra.mxu0 0
        %403 = vmatprep.subr.bf16.mxu0 0
        %404 = vmatpush1.bf16.msra.mxu0 0
        %405 = vmatprep.subr.bf16.mxu0 0
        %406 = vmatpush1.bf16.msra.mxu0 0
        %407 = vmatprep.subr.bf16.mxu0 0
        %408 = vmatpush1.bf16.msra.mxu0 0
        %409 = vmatprep.subr.bf16.mxu0 0
        %410 = vmatpush1.bf16.msra.mxu0 0
        %411 = vmatprep.subr.bf16.mxu0 0
        %412 = vmatpush1.bf16.msra.mxu0 0
        %413 = vmatprep.subr.bf16.mxu0 0
        %414 = vmatpush1.bf16.msra.mxu0 0
        %415 = vmatprep.subr.bf16.mxu0 0
        %416 = vmatpush1.bf16.msra.mxu0 0
        %417 = vmatprep.subr.bf16.mxu0 0
        %418 = vmatpush1.bf16.msra.mxu0 0
        %419 = vmatprep.subr.bf16.mxu0 0
        %420 = vmatpush1.bf16.msra.mxu0 0
        %421 = vmatprep.subr.bf16.mxu0 0
        %422 = vmatpush1.bf16.msra.mxu0 0
        %423 = vmatprep.subr.bf16.mxu0 0
        %424 = vmatpush1.bf16.msra.mxu0 0
        %425 = vmatprep.subr.bf16.mxu0 0
        %426 = vmatpush1.bf16.msra.mxu0 0
        %427 = vmatprep.mubr.bf16.mxu0 0
        %428 = vmatmul.mubr.bf16.gmra.mrb[0].mxu0 %v380
        %v429 = vpop.f32.mrb[0].mxu0
        %v430 = vadd.f32 %v321, %v429
        %v431 = vpop.f32.mrb[0].mxu0
        %v432 = vpop.f32.mrb[0].mxu0
        %v433 = vadd.f32 %v326, %v432
        %v434 = vpop.f32.mrb[0].mxu0
        %435 = vmatprep.mubr.bf16.mxu0 0
        %436 = vmatmul.mubr.bf16.gmra.mrb[0].mxu0 %v383
        %v437 = vpop.f32.mrb[0].mxu0
        %v438 = vadd.f32 %v331, %v437
        %v439 = vpop.f32.mrb[0].mxu0
        %v440 = vpop.f32.mrb[0].mxu0
        %v441 = vadd.f32 %v336, %v440
        %v442 = vpop.f32.mrb[0].mxu0
        %443 = vmatprep.mubr.bf16.mxu0 0
        %444 = vmatmul.mubr.bf16.gmra.mrb[0].mxu0 %v386
        %v445 = vpop.f32.mrb[0].mxu0
        %v446 = vadd.f32 %v341, %v445
        %v447 = vpop.f32.mrb[0].mxu0
        %v448 = vpop.f32.mrb[0].mxu0
        %v449 = vadd.f32 %v346, %v448
        %v450 = vpop.f32.mrb[0].mxu0
        %451 = vmatprep.mubr.bf16.mxu0 0
        %452 = vmatmul.mubr.bf16.gmra.mrb[0].mxu0 %v389
        %v453 = vpop.f32.mrb[0].mxu0
        %v454 = vadd.f32 %v351, %v453
        %v455 = vpop.f32.mrb[0].mxu0
        %v456 = vpop.f32.mrb[0].mxu0
        %v457 = vadd.f32 %v356, %v456
        %v458 = vpop.f32.mrb[0].mxu0
        %459 = vdwg.mxu0
        %v460 = vmax.f32 %v430, 0.0
        %v461 = vmax.f32 %v433, 0.0
        %v462 = vmax.f32 %v438, 0.0
        %v463 = vmax.f32 %v441, 0.0
        %v464 = vmax.f32 %v446, 0.0
        %v465 = vmax.f32 %v449, 0.0
        %v466 = vmax.f32 %v454, 0.0
        %v467 = vmax.f32 %v457, 0.0
        %v468 = vld [vmem:[%s3] sm:$0xf]
        %v469 = vld [vmem:[%s3 + $0x4] sm:$0xf]
        %v470 = vld [vmem:[%s3 + $0x8] sm:$0xf]
        %v471 = vld [vmem:[%s3 + $0xc] sm:$0xf]
        %v472 = vld [vmem:[%s3 + $0x10] sm:$0xf]
        %v473 = vld [vmem:[%s3 + $0x14] sm:$0xf]
        %v474 = vld [vmem:[%s3 + $0x18] sm:$0xf]
        %v475 = vld [vmem:[%s3 + $0x1c] sm:$0xf]
        %v476 = vpack.c.bf16 %v461, %v460
        %v477 = vpack.c.bf16 %v463, %v462
        %v478 = vpack.c.bf16 %v465, %v464
        %v479 = vpack.c.bf16 %v467, %v466
        %v480 = vld [vmem:[%s4] sm:$0xff]
        %v481 = vld [vmem:[%s4 + $0x8] sm:$0xff]
        %v482 = vld [vmem:[%s4 + $0x10] sm:$0xff]
        %v483 = vld [vmem:[%s4 + $0x18] sm:$0xff]
        %v484 = vld [vmem:[%s4 + $0x20] sm:$0xff]
        %v485 = vld [vmem:[%s4 + $0x28] sm:$0xff]
        %v486 = vld [vmem:[%s4 + $0x30] sm:$0xff]
        %v487 = vld [vmem:[%s4 + $0x38] sm:$0xff]
        %489 = vset.pattern.permute.xlu0 0
        %490 = vperm.xlu0 %489, %v480
        %v491 = vpop.permute.xlu0 %490
        %494 = vset.pattern.permute.xlu0 0
        %495 = vperm.xlu0 %494, %v481
        %v496 = vpop.permute.xlu0 %495
        %499 = vset.pattern.permute.xlu0 0
        %500 = vperm.xlu0 %499, %v482
        %v501 = vpop.permute.xlu0 %500
        %504 = vset.pattern.permute.xlu0 0
        %505 = vperm.xlu0 %504, %v483
        %v506 = vpop.permute.xlu0 %505
        %509 = vset.pattern.permute.xlu0 0
        %510 = vperm.xlu0 %509, %v484
        %v511 = vpop.permute.xlu0 %510
        %514 = vset.pattern.permute.xlu0 0
        %515 = vperm.xlu0 %514, %v485
        %v516 = vpop.permute.xlu0 %515
        %519 = vset.pattern.permute.xlu0 0
        %520 = vperm.xlu0 %519, %v486
        %v521 = vpop.permute.xlu0 %520
        %524 = vset.pattern.permute.xlu0 0
        %525 = vperm.xlu0 %524, %v487
        %v526 = vpop.permute.xlu0 %525
        %v536 = vunpack.c.l.b16 %v468
        %v537 = vunpack.c.l.b16 %v469
        %v538 = vunpack.c.l.b16 %v470
        %v539 = vunpack.c.l.b16 %v471
        %v540 = vunpack.c.l.b16 %v472
        %v541 = vunpack.c.l.b16 %v473
        %v542 = vunpack.c.l.b16 %v474
        %v543 = vunpack.c.l.b16 %v475
        %v544 = vpack.c.b16 %v537, %v536
        %v545 = vpack.c.b16 %v539, %v538
        %v546 = vpack.c.b16 %v541, %v540
        %v547 = vpack.c.b16 %v543, %v542
        %vm548 = vcmask 523264
        %v550 = vsel %vm548, %v544, 0
        %v553 = vsel %vm548, %v545, 0
        %v556 = vsel %vm548, %v546, 0
        %v559 = vsel %vm548, %v547, 0
        %561 = vmatprep.subr.bf16.mxu0 0
        %562 = vmatpush1.bf16.msra.mxu0 %v476
        %563 = vmatprep.subr.bf16.mxu0 0
        %564 = vmatpush1.bf16.msra.mxu0 %v477
        %565 = vmatprep.subr.bf16.mxu0 0
        %566 = vmatpush1.bf16.msra.mxu0 %v478
        %567 = vmatprep.subr.bf16.mxu0 0
        %568 = vmatpush1.bf16.msra.mxu0 %v479
        %569 = vmatprep.subr.bf16.mxu0 0
        %570 = vmatpush1.bf16.msra.mxu0 0
        %571 = vmatprep.subr.bf16.mxu0 0
        %572 = vmatpush1.bf16.msra.mxu0 0
        %573 = vmatprep.subr.bf16.mxu0 0
        %574 = vmatpush1.bf16.msra.mxu0 0
        %575 = vmatprep.subr.bf16.mxu0 0
        %576 = vmatpush1.bf16.msra.mxu0 0
        %577 = vmatprep.subr.bf16.mxu0 0
        %578 = vmatpush1.bf16.msra.mxu0 0
        %579 = vmatprep.subr.bf16.mxu0 0
        %580 = vmatpush1.bf16.msra.mxu0 0
        %581 = vmatprep.subr.bf16.mxu0 0
        %582 = vmatpush1.bf16.msra.mxu0 0
        %583 = vmatprep.subr.bf16.mxu0 0
        %584 = vmatpush1.bf16.msra.mxu0 0
        %585 = vmatprep.subr.bf16.mxu0 0
        %586 = vmatpush1.bf16.msra.mxu0 0
        %587 = vmatprep.subr.bf16.mxu0 0
        %588 = vmatpush1.bf16.msra.mxu0 0
        %589 = vmatprep.subr.bf16.mxu0 0
        %590 = vmatpush1.bf16.msra.mxu0 0
        %591 = vmatprep.subr.bf16.mxu0 0
        %592 = vmatpush1.bf16.msra.mxu0 0
        %593 = vmatprep.mubr.bf16.mxu0 0
        %594 = vmatmul.mubr.bf16.gmra.mrb[0].mxu0 %v550
        %v595 = vpop.f32.mrb[0].mxu0
        %v596 = vadd.f32 %v491, %v595
        %v597 = vpop.f32.mrb[0].mxu0
        %v598 = vpop.f32.mrb[0].mxu0
        %v599 = vadd.f32 %v496, %v598
        %v600 = vpop.f32.mrb[0].mxu0
        %601 = vmatprep.mubr.bf16.mxu0 0
        %602 = vmatmul.mubr.bf16.gmra.mrb[0].mxu0 %v553
        %v603 = vpop.f32.mrb[0].mxu0
        %v604 = vadd.f32 %v501, %v603
        %v605 = vpop.f32.mrb[0].mxu0
        %v606 = vpop.f32.mrb[0].mxu0
        %v607 = vadd.f32 %v506, %v606
        %v608 = vpop.f32.mrb[0].mxu0
        %609 = vmatprep.mubr.bf16.mxu0 0
        %610 = vmatmul.mubr.bf16.gmra.mrb[0].mxu0 %v556
        %v611 = vpop.f32.mrb[0].mxu0
        %v612 = vadd.f32 %v511, %v611
        %v613 = vpop.f32.mrb[0].mxu0
        %v614 = vpop.f32.mrb[0].mxu0
        %v615 = vadd.f32 %v516, %v614
        %v616 = vpop.f32.mrb[0].mxu0
        %617 = vmatprep.mubr.bf16.mxu0 0
        %618 = vmatmul.mubr.bf16.gmra.mrb[0].mxu0 %v559
        %v619 = vpop.f32.mrb[0].mxu0
        %v620 = vadd.f32 %v521, %v619
        %v621 = vpop.f32.mrb[0].mxu0
        %v622 = vpop.f32.mrb[0].mxu0
        %v623 = vadd.f32 %v526, %v622
        %v624 = vpop.f32.mrb[0].mxu0
        %625 = vdwg.mxu0
        %v626 = vmax.f32 %v596, 0.0
        %v627 = vmax.f32 %v599, 0.0
        %v628 = vmax.f32 %v604, 0.0
        %v629 = vmax.f32 %v607, 0.0
        %v630 = vmax.f32 %v612, 0.0
        %v631 = vmax.f32 %v615, 0.0
        %v632 = vmax.f32 %v620, 0.0
        %v633 = vmax.f32 %v623, 0.0
        %v634 = vld [vmem:[%s5] sm:$0xff]
        %v635 = vld [vmem:[%s5 + $0x8] sm:$0xff]
        %v636 = vld [vmem:[%s5 + $0x10] sm:$0xff]
        %v637 = vld [vmem:[%s5 + $0x18] sm:$0xff]
        %v638 = vld [vmem:[%s5 + $0x20] sm:$0xff]
        %v639 = vld [vmem:[%s5 + $0x28] sm:$0xff]
        %v640 = vld [vmem:[%s5 + $0x30] sm:$0xff]
        %v641 = vld [vmem:[%s5 + $0x38] sm:$0xff]
        %643 = vset.pattern.permute.xlu0 0
        %644 = vperm.xlu0 %643, %v634
        %v645 = vpop.permute.xlu0 %644
        %648 = vset.pattern.permute.xlu0 0
        %649 = vperm.xlu0 %648, %v635
        %v650 = vpop.permute.xlu0 %649
        %653 = vset.pattern.permute.xlu0 0
        %654 = vperm.xlu0 %653, %v636
        %v655 = vpop.permute.xlu0 %654
        %658 = vset.pattern.permute.xlu0 0
        %659 = vperm.xlu0 %658, %v637
        %v660 = vpop.permute.xlu0 %659
        %663 = vset.pattern.permute.xlu0 0
        %664 = vperm.xlu0 %663, %v638
        %v665 = vpop.permute.xlu0 %664
        %668 = vset.pattern.permute.xlu0 0
        %669 = vperm.xlu0 %668, %v639
        %v670 = vpop.permute.xlu0 %669
        %673 = vset.pattern.permute.xlu0 0
        %674 = vperm.xlu0 %673, %v640
        %v675 = vpop.permute.xlu0 %674
        %678 = vset.pattern.permute.xlu0 0
        %679 = vperm.xlu0 %678, %v641
        %v680 = vpop.permute.xlu0 %679
        %v682 = vmul.f32 %v626, %v645
        %v683 = vmul.f32 %v627, %v650
        %v684 = vmul.f32 %v628, %v655
        %v685 = vmul.f32 %v629, %v660
        %v686 = vmul.f32 %v630, %v665
        %v687 = vmul.f32 %v631, %v670
        %v688 = vmul.f32 %v632, %v675
        %v689 = vmul.f32 %v633, %v680
        %v690 = vadd.f32 %v682, %v683
        %v691 = vadd.f32 %v690, %v684
        %v692 = vadd.f32 %v691, %v685
        %v693 = vadd.f32 %v692, %v686
        %v694 = vadd.f32 %v693, %v687
        %v695 = vadd.f32 %v694, %v688
        %v696 = vadd.f32 %v695, %v689
        %v697 = vrot.slane %v696, 4
        %v698 = vadd.f32 %v696, %v697
        %v699 = vrot.slane %v698, 2
        %v700 = vadd.f32 %v698, %v699
        %v701 = vrot.slane %v700, 1
        %v702 = vadd.f32 %v700, %v701
        %s703 = sld [smem:[#allocation2]]
        %v704 = vstv %s703
        %v705 = vadd.f32 %v702, %v704
        %706 = vst [vmem:[%s291] sm:$0x1] %v705
        %s707 = sand.u32 %s198, 1
        %s708 = scalar_lea.sflag [#allocation4], %s707
        %s709 = sand.u32 %s198, 1
        %s710 = scalar_lea.vmem [#allocation3], %s709
        // Predicated region
        $region49: #{tpu_custom_call.1} parent=47 // pred_check
          %p711 = pneg %p208
        $region50: #{tpu_custom_call.1} parent=47 // pred_check_branch
          %713 = sbr.rel (%p711) target = $region52
        $region51: #{tpu_custom_call.1} parent=47 // pred_region
          %s715 = ssub.s32 16, 16
          %716 = vsyncadd %s708, %s715
          %s717 = sadd.s32 %s27, %s26
          %s718 = smul.addr %s717, 16
          %s719 = scalar_lea.hbm %s7, %s718
          %s721 = sshll.u32 %s710, 4
          %s722 = int_to_ptr.vmem [resolvable:$true] %s721
          %724 = dma.vmem_to_hbm [thread:$0]  %s722, 16, %s719, %s708
        $region52: #{tpu_custom_call.1} parent=47 // pred_fallthru
          _
      $region48: #{tpu_custom_call.1} parent=5 // pred_fallthru
        _
      %p725 = scmp.le.s32.totalorder 2, %s17
      // Predicated region
      $region53: #{tpu_custom_call.1} parent=5 // pred_check
        %p726 = pneg %p725
      $region54: #{tpu_custom_call.1} parent=5 // pred_check_branch
        %728 = sbr.rel (%p726) target = $region56
      $region55: #{tpu_custom_call.1} parent=5 // pred_region
        %s729 = ssub.s32 %s17, 2
        // Predicated region
        $region57: #{tpu_custom_call.1} parent=55 // pred_check
          %p730 = pneg %p214
        $region58: #{tpu_custom_call.1} parent=55 // pred_check_branch
          %732 = sbr.rel (%p730) target = $region60
        $region59: #{tpu_custom_call.1} parent=55 // pred_region
          %s733 = sand.u32 %s199, 1
          %s734 = scalar_lea.sflag [#allocation4], %s733
          %s735 = sand.u32 %s199, 1
          %s736 = scalar_lea.vmem [#allocation3], %s735
          %737 = dma.done %s734, 16
        $region60: #{tpu_custom_call.1} parent=55 // pred_fallthru
          _
      $region56: #{tpu_custom_call.1} parent=5 // pred_fallthru
        _
    $region6: #{tpu_custom_call.1} parent=1 // loop_footer
      %s21 = sadd.s32 1, %s17
    $region7: #{tpu_custom_call.1} parent=1 // loop_footer_branch
      %16 = sbr.rel target = $region3
    $region8: #{tpu_custom_call.1} parent=1 // loop_exit
      _
    %738 = vsyncpa [#allocation4], 1
    %s739 = scalar_lea.sflag [#allocation4], 1
    %740 = vsyncpa %s739, 1

</llo_original>
